<compile_context>
chip_gen: v7x
topology: tpu7x:2x2x1
jax: 0.10.0
libtpu: 0.0.40
codegen_flags: <defaults>
</compile_context>

<pallas_src>
import jax
import jax.numpy as jnp
from jax.experimental import pallas as pl
from jax.experimental.pallas import tpu as pltpu

LANE = 128     # f32 vreg lane width; all feature axes are padded to this
OD_PAD = 8     # output columns kept in the lane-packed output (>= output_dim)


def _round_up(x, m):
    return ((x + m - 1) // m) * m


def _choose_tm(B):
    """Batch tile: multiple of 128 (required by the lane-packed output), up to
    1024 (near the measured HBM-roofline knee), capped so the grid has >= 2
    steps when the batch allows it (v7x megacore sharding; harmless on v5e/v6e).
    """
    Bp = _round_up(B, 128)
    if Bp <= 128:
        return 128
    return int(min(1024, _round_up(Bp // 2, 128)))


# -----------------------------------------------------------------------------
# Pallas kernel: the MLP hot path on one (TM, 128) batch tile.
#   x -> ReLU(L0) -> ReLU(L1) -> ReLU(L2) -> output_layer
# x arrives bf16 (lane-dense), weights as one packed (L,128,128) bf16 ref,
# biases as one packed (L,128) f32 ref; weights/biases are VMEM-resident across
# the whole grid (constant index_map).  Output is lane-packed: only the first
# OD_PAD columns of the final layer are written, one 8x128 slab per 128 rows.
# -----------------------------------------------------------------------------
def likes_mlp_kernel(x_ref, w_ref, b_ref, o_ref):
    n_layers = w_ref.shape[0]          # NUM_LAYERS hidden layers + output layer
    b = b_ref[...]                     # (L, 128) f32, loaded once
    h = x_ref[...]                     # (TM, 128) bf16

    # Hidden layers: bf16 MXU operands, f32 accumulate + bias + ReLU (VPU, f32).
    for l in range(n_layers - 1):
        z = jnp.dot(h, w_ref[l], preferred_element_type=jnp.float32) + b[l:l + 1, :]
        h = jnp.maximum(z, 0.0).astype(jnp.bfloat16)

    # Output layer (no activation), f32 result.
    z = jnp.dot(h, w_ref[n_layers - 1],
                preferred_element_type=jnp.float32) + b[n_layers - 1:n_layers, :]

    # Lane-pack the writeback: only columns [0, OD_PAD) of z are real.  Transpose
    # each 128x128 chunk on the XLU and keep the top OD_PAD rows -> (TM//128, 8, 128)
    # packed output, 16x less output HBM traffic than the padded (TM, 128) slab.
    n_chunks = o_ref.shape[0]
    for c in range(n_chunks):
        zc = z[c * 128:(c + 1) * 128, :]       # (128, 128) f32
        o_ref[c, :, :] = zc.T[:OD_PAD, :]      # row d == column d of zc


def likes_estimator_mlp(x_bf16, w_packed, b_packed, *, tm=None):
    """Runs the nn.Linear stack + ReLU + output layer in Pallas.

    x_bf16:   (B, 128)  bf16 lane-dense input slab.
    w_packed: (L, 128, 128) bf16.   b_packed: (L, 128) f32.
    Returns (B, OD_PAD) f32; caller slices the real output columns.
    """
    B, D = x_bf16.shape
    L = w_packed.shape[0]
    if tm is None:
        tm = _choose_tm(B)
    assert tm % 128 == 0
    Bp = _round_up(B, tm)
    if Bp != B:
        x_bf16 = jnp.pad(x_bf16, ((0, Bp - B), (0, 0)))
    chunks_per_tile = tm // 128

    out_packed = pl.pallas_call(
        likes_mlp_kernel,
        out_shape=jax.ShapeDtypeStruct((Bp // 128, OD_PAD, D), jnp.float32),
        grid_spec=pltpu.PrefetchScalarGridSpec(
            num_scalar_prefetch=0,
            grid=(Bp // tm,),
            in_specs=[
                # batch tile: pipelined across grid steps (bf16 -> half the DMA)
                pl.BlockSpec((tm, D), lambda i: (i, 0)),
                # packed weights / biases: constant index_map -> DMA'd once,
                # VMEM-resident for the whole call
                pl.BlockSpec((L, D, D), lambda i: (0, 0, 0)),
                pl.BlockSpec((L, D), lambda i: (0, 0)),
            ],
            # lane-packed output: last two dims (8, 128) aligned
            out_specs=pl.BlockSpec((chunks_per_tile, OD_PAD, D),
                                   lambda i: (i, 0, 0)),
        ),
        compiler_params=pltpu.CompilerParams(
            # shard batch tiles across both TensorCores on v7x; harmless on v5e/v6e
            dimension_semantics=("parallel",),
        ),
    )(x_bf16, w_packed, b_packed)

    # Unpack: out_packed[c, d, i] == y[c*128 + i, d]
    out = jnp.transpose(out_packed, (0, 2, 1)).reshape(Bp, OD_PAD)
    return out[:B]


# -----------------------------------------------------------------------------
# Parameter construction (deterministic, matches nn.Linear shapes of
# LikesEstimator(input_dim, hidden_dim, output_dim, num_layers=3)).
# Weights stored (in, out) so the kernel computes x @ W + b (== torch x @ W.T).
# -----------------------------------------------------------------------------
def init_params(key, input_dim, hidden_dim, output_dim, num_layers):
    dims = [input_dim] + [hidden_dim] * num_layers
    params = []
    for i in range(num_layers):
        key, kw, kb = jax.random.split(key, 3)
        bound = 1.0 / jnp.sqrt(dims[i])
        w = jax.random.uniform(kw, (dims[i], dims[i + 1]), jnp.float32, -bound, bound)
        b = jax.random.uniform(kb, (1, dims[i + 1]), jnp.float32, -bound, bound)
        params.append((w, b))
    key, kw, kb = jax.random.split(key, 3)
    bound = 1.0 / jnp.sqrt(hidden_dim)
    wo = jax.random.uniform(kw, (hidden_dim, output_dim), jnp.float32, -bound, bound)
    bo = jax.random.uniform(kb, (1, output_dim), jnp.float32, -bound, bound)
    params.append((wo, bo))
    return params, key


def pack_params(params):
    """Zero-pad every weight to (LANE, LANE) and bias to (LANE,), stack into one
    bf16 weight tensor and one f32 bias tensor (a single DMA each).  Zero
    padding is exact: padded columns / bias lanes stay 0 through every ReLU."""
    ws, bs = [], []
    for w, b in params:
        assert w.shape[0] <= LANE and w.shape[1] <= LANE, (
            f"weight {w.shape} exceeds the {LANE}x{LANE} packing tile")
        assert b.shape[-1] <= LANE, f"bias {b.shape} exceeds {LANE} lanes"
        wp = jnp.zeros((LANE, LANE), jnp.float32).at[:w.shape[0], :w.shape[1]].set(w)
        bp = jnp.zeros((LANE,), jnp.float32).at[:b.shape[-1]].set(b.reshape(-1))
        ws.append(wp)
        bs.append(bp)
    return jnp.stack(ws).astype(jnp.bfloat16), jnp.stack(bs)


def text_transformer_stub(token_ids, embed_table):
    """Deterministic stand-in: embedding lookup; 'CLS' = position 0 vector."""
    hidden = embed_table[token_ids]          # (B, seq, emb_dim)
    return hidden[:, 0]                      # last_hidden_state[:, 0]


def build_mlp_input(time_step, follows, followers, cls):
    """torch.cat((time_step, follows, followers, cls), dim=1), zero-padded to a
    lane-dense (B, 128) bf16 slab (padded lanes stay 0 through the MLP because
    the corresponding weight columns / bias entries are 0)."""
    B = time_step.shape[0]
    feat = 3 + cls.shape[1]
    assert feat <= LANE
    x = jnp.concatenate(
        [time_step, follows, followers, cls,
         jnp.zeros((B, LANE - feat), jnp.float32)], axis=1)
    return x.astype(jnp.bfloat16)


def likes_estimator_forward(time_step, follows, followers, text_input,
                            embed_table, w_packed, b_packed, output_dim):
    assert output_dim <= OD_PAD, "lane-packed output keeps only the first 8 columns"
    cls = text_transformer_stub(text_input, embed_table)        # (B, emb_dim)
    x = build_mlp_input(time_step, follows, followers, cls)     # (B, 128) bf16
    out = likes_estimator_mlp(x, w_packed, b_packed)             # (B, OD_PAD) f32
    return out[:, :output_dim]


# -----------------------------------------------------------------------------
if __name__ == "__main__":
    B = 8          # batch
    SEQ = 8        # token sequence length
    EMB = 32       # transformer hidden size
    HIDDEN = 64    # hidden_dim
    OUT = 1        # output_dim (predicted likes)
    NUM_LAYERS = 3
    INPUT_DIM = 3 + EMB   # time_step + follows + followers + CLS embedding

    key = jax.random.PRNGKey(0)
    params, key = init_params(key, INPUT_DIM, HIDDEN, OUT, NUM_LAYERS)
    w_packed, b_packed = pack_params(params)

    key, k1, k2, k3, k4, k5 = jax.random.split(key, 6)
    time_step = jax.random.normal(k1, (B, 1), jnp.float32)
    follows = jax.random.normal(k2, (B, 1), jnp.float32)
    followers = jax.random.normal(k3, (B, 1), jnp.float32)
    text_input = jax.random.randint(k4, (B, SEQ), 0, 100, jnp.int32)
    embed_table = jax.random.normal(k5, (100, EMB), jnp.float32) * 0.02

    out = likes_estimator_forward(time_step, follows, followers, text_input,
                                  embed_table, w_packed, b_packed, OUT)
    jax.block_until_ready(out)

    # Pure-JAX reference mirroring the kernel's bf16-operand / f32-accumulate math.
    cls = text_transformer_stub(text_input, embed_table)
    x_pad = build_mlp_input(time_step, follows, followers, cls)   # bf16
    h = x_pad
    n = w_packed.shape[0]
    for l in range(n - 1):
        h = jnp.maximum(
            jnp.dot(h, w_packed[l], preferred_element_type=jnp.float32)
            + b_packed[l:l + 1, :], 0.0).astype(jnp.bfloat16)
    ref = jnp.dot(h, w_packed[n - 1],
                  preferred_element_type=jnp.float32) + b_packed[n - 1:n, :]
    ref = ref[:, :OUT]

    assert out.shape == (B, OUT)
    assert jnp.allclose(out, ref, atol=1e-3, rtol=1e-3), \
        float(jnp.max(jnp.abs(out - ref)))

    print("KERNEL_OK")
</pallas_src>

<mosaic_0001>
module attributes {stable_mosaic.version = 11 : i64} {
  func.func @likes_mlp_kernel(%arg0: i32, %arg1: memref<128x128xbf16, #tpu.memory_space<vmem>>, %arg2: memref<4x128x128xbf16, #tpu.memory_space<vmem>>, %arg3: memref<4x128xf32, #tpu.memory_space<vmem>>, %arg4: memref<1x8x128xf32, #tpu.memory_space<vmem>>) attributes {dimension_semantics = [#tpu.dimension_semantics<parallel>], iteration_bounds = array<i64: 1>, scalar_prefetch = 0 : i64, scratch_operands = 0 : i64, tpu.core_type = #tpu.core_type<tc>, window_params = [{transform_indices = @transform_0, window_bounds = array<i64: 128, 128>}, {pipeline_mode = #tpu.pipeline_mode<synchronous>, transform_indices = @transform_1, window_bounds = array<i64: 4, 128, 128>}, {pipeline_mode = #tpu.pipeline_mode<synchronous>, transform_indices = @transform_2, window_bounds = array<i64: 4, 128>}, {transform_indices = @transform_3, window_bounds = array<i64: 1, 8, 128>}]} {
    %c0 = arith.constant 0 : index
    %c0_0 = arith.constant 0 : index
    %0 = vector.load %arg3[%c0, %c0_0] : memref<4x128xf32, #tpu.memory_space<vmem>>, vector<4x128xf32>
    %c0_1 = arith.constant 0 : index
    %c0_2 = arith.constant 0 : index
    %1 = vector.load %arg1[%c0_1, %c0_2] : memref<128x128xbf16, #tpu.memory_space<vmem>>, vector<128x128xbf16>
    %c0_3 = arith.constant 0 : index
    %c0_4 = arith.constant 0 : index
    %c0_5 = arith.constant 0 : index
    %2 = vector.load %arg2[%c0_3, %c0_4, %c0_5] : memref<4x128x128xbf16, #tpu.memory_space<vmem>>, vector<1x128x128xbf16>
    %3 = vector.shape_cast %2 : vector<1x128x128xbf16> to vector<128x128xbf16>
    %cst = arith.constant dense<0.000000e+00> : vector<128x128xf32>
    %4 = tpu.matmul %1, %3, %cst {dimension_numbers = #tpu.dot_dimension_numbers<[1], [0], [0], [1], [0, 0, 1, 1], [], []>} : vector<128x128xbf16>, vector<128x128xbf16>, vector<128x128xf32> -> vector<128x128xf32>
    %5 = vector.extract_strided_slice %0 {offsets = [0, 0], sizes = [1, 128], strides = [1, 1]} : vector<4x128xf32> to vector<1x128xf32>
    %6 = vector.broadcast %5 : vector<1x128xf32> to vector<128x128xf32>
    %7 = arith.addf %4, %6 : vector<128x128xf32>
    %cst_6 = arith.constant 0.000000e+00 : f32
    %8 = vector.broadcast %cst_6 : f32 to vector<128x128xf32>
    %9 = arith.maximumf %7, %8 : vector<128x128xf32>
    %10 = arith.truncf %9 : vector<128x128xf32> to vector<128x128xbf16>
    %c1 = arith.constant 1 : index
    %c0_7 = arith.constant 0 : index
    %c0_8 = arith.constant 0 : index
    %11 = vector.load %arg2[%c1, %c0_7, %c0_8] : memref<4x128x128xbf16, #tpu.memory_space<vmem>>, vector<1x128x128xbf16>
    %12 = vector.shape_cast %11 : vector<1x128x128xbf16> to vector<128x128xbf16>
    %cst_9 = arith.constant dense<0.000000e+00> : vector<128x128xf32>
    %13 = tpu.matmul %10, %12, %cst_9 {dimension_numbers = #tpu.dot_dimension_numbers<[1], [0], [0], [1], [0, 0, 1, 1], [], []>} : vector<128x128xbf16>, vector<128x128xbf16>, vector<128x128xf32> -> vector<128x128xf32>
    %14 = vector.extract_strided_slice %0 {offsets = [1, 0], sizes = [1, 128], strides = [1, 1]} : vector<4x128xf32> to vector<1x128xf32>
    %15 = vector.broadcast %14 : vector<1x128xf32> to vector<128x128xf32>
    %16 = arith.addf %13, %15 : vector<128x128xf32>
    %cst_10 = arith.constant 0.000000e+00 : f32
    %17 = vector.broadcast %cst_10 : f32 to vector<128x128xf32>
    %18 = arith.maximumf %16, %17 : vector<128x128xf32>
    %19 = arith.truncf %18 : vector<128x128xf32> to vector<128x128xbf16>
    %c2 = arith.constant 2 : index
    %c0_11 = arith.constant 0 : index
    %c0_12 = arith.constant 0 : index
    %20 = vector.load %arg2[%c2, %c0_11, %c0_12] : memref<4x128x128xbf16, #tpu.memory_space<vmem>>, vector<1x128x128xbf16>
    %21 = vector.shape_cast %20 : vector<1x128x128xbf16> to vector<128x128xbf16>
    %cst_13 = arith.constant dense<0.000000e+00> : vector<128x128xf32>
    %22 = tpu.matmul %19, %21, %cst_13 {dimension_numbers = #tpu.dot_dimension_numbers<[1], [0], [0], [1], [0, 0, 1, 1], [], []>} : vector<128x128xbf16>, vector<128x128xbf16>, vector<128x128xf32> -> vector<128x128xf32>
    %23 = vector.extract_strided_slice %0 {offsets = [2, 0], sizes = [1, 128], strides = [1, 1]} : vector<4x128xf32> to vector<1x128xf32>
    %24 = vector.broadcast %23 : vector<1x128xf32> to vector<128x128xf32>
    %25 = arith.addf %22, %24 : vector<128x128xf32>
    %cst_14 = arith.constant 0.000000e+00 : f32
    %26 = vector.broadcast %cst_14 : f32 to vector<128x128xf32>
    %27 = arith.maximumf %25, %26 : vector<128x128xf32>
    %28 = arith.truncf %27 : vector<128x128xf32> to vector<128x128xbf16>
    %c3 = arith.constant 3 : index
    %c0_15 = arith.constant 0 : index
    %c0_16 = arith.constant 0 : index
    %29 = vector.load %arg2[%c3, %c0_15, %c0_16] : memref<4x128x128xbf16, #tpu.memory_space<vmem>>, vector<1x128x128xbf16>
    %30 = vector.shape_cast %29 : vector<1x128x128xbf16> to vector<128x128xbf16>
    %cst_17 = arith.constant dense<0.000000e+00> : vector<128x128xf32>
    %31 = tpu.matmul %28, %30, %cst_17 {dimension_numbers = #tpu.dot_dimension_numbers<[1], [0], [0], [1], [0, 0, 1, 1], [], []>} : vector<128x128xbf16>, vector<128x128xbf16>, vector<128x128xf32> -> vector<128x128xf32>
    %32 = vector.extract_strided_slice %0 {offsets = [3, 0], sizes = [1, 128], strides = [1, 1]} : vector<4x128xf32> to vector<1x128xf32>
    %33 = vector.broadcast %32 : vector<1x128xf32> to vector<128x128xf32>
    %34 = arith.addf %31, %33 : vector<128x128xf32>
    %35 = tpu.transpose %34, [1, 0] : vector<128x128xf32> -> vector<128x128xf32>
    %36 = vector.extract_strided_slice %35 {offsets = [0, 0], sizes = [8, 128], strides = [1, 1]} : vector<128x128xf32> to vector<8x128xf32>
    %c0_18 = arith.constant 0 : index
    %c0_19 = arith.constant 0 : index
    %c0_20 = arith.constant 0 : index
    %37 = vector.load %arg4[%c0_18, %c0_19, %c0_20] : memref<1x8x128xf32, #tpu.memory_space<vmem>>, vector<1x8x128xf32>
    %38 = vector.shape_cast %37 : vector<1x8x128xf32> to vector<8x128xf32>
    %39 = vector.shape_cast %36 : vector<8x128xf32> to vector<1x8x128xf32>
    tpu.vector_store %arg4[%c0_18, %c0_19, %c0_20], %39 {strides = array<i32>} : memref<1x8x128xf32, #tpu.memory_space<vmem>>, vector<1x8x128xf32>,
    return
  }
  func.func @transform_0(%arg0: i32) -> (i32, i32) {
    %c0_i32 = arith.constant 0 : i32
    %c0_i32_0 = arith.constant 0 : i32
    return %arg0, %c0_i32 : i32, i32
  }
  func.func @transform_1(%arg0: i32) -> (i32, i32, i32) {
    %c0_i32 = arith.constant 0 : i32
    %c0_i32_0 = arith.constant 0 : i32
    %c0_i32_1 = arith.constant 0 : i32
    %c0_i32_2 = arith.constant 0 : i32
    return %c0_i32, %c0_i32_0, %c0_i32_1 : i32, i32, i32
  }
  func.func @transform_2(%arg0: i32) -> (i32, i32) {
    %c0_i32 = arith.constant 0 : i32
    %c0_i32_0 = arith.constant 0 : i32
    %c0_i32_1 = arith.constant 0 : i32
    return %c0_i32, %c0_i32_0 : i32, i32
  }
  func.func @transform_3(%arg0: i32) -> (i32, i32, i32) {
    %c0_i32 = arith.constant 0 : i32
    %c0_i32_0 = arith.constant 0 : i32
    %c0_i32_1 = arith.constant 0 : i32
    return %arg0, %c0_i32, %c0_i32_0 : i32, i32, i32
  }
}

</mosaic_0001>

<llo_original>
// kernel: tpu_custom_call.1
$region0: #{tpu_custom_call.1}
  #allocation0 [shape = 'u32[]', space=smem, size = 0x4, offset = 0x4, fixed_abs, tag = 'smem constant byte address 0x4 - core index']
  #allocation1 [shape = 'u32[144,128]{1,0:T(1,128)}', space=vmem, size = 0x12000, scoped, tag = 'internal scratch']
  %s0 = inlined_call_operand.hbm [shape: bf16[128,128], index: 0, kind: input, shape index: {}]
  %s1 = inlined_call_operand.hbm [shape: bf16[4,128,128], index: 1, kind: input, shape index: {}]
  %s2 = inlined_call_operand.vmem [shape: f32[4,128], index: 2, kind: input, shape index: {}]
  %s3 = inlined_call_operand.hbm [shape: f32[1,8,128], index: 3, kind: output, shape index: {}]
  %s4 = sld [smem:[#allocation0]]
  $region30: #{tpu_custom_call.1} parent=0
    _
  %s6 = ssub.s32 1, %s4
  %s7 = scalar_select 0, %s6, %s4
  $region1: #{tpu_custom_call.1} parent=0
    #allocation2 [shape = 'u8[32768]{0}', space=vmem, size = 0x8000, scoped, tag = 'input window, operand 0, single buffered']
    #allocation3 [shape = 's32[1]{0}', space=sflag, size = 0x4, scoped, tag = 'scoped memory for tpu_custom_call.1']
    #allocation4 [shape = 's32[1]{0}', space=sflag, size = 0x4, scoped, tag = 'scoped memory for tpu_custom_call.1']
    #allocation5 [shape = 'u8[131072]{0}', space=vmem, size = 0x20000, scoped, tag = 'input window, operand 1, single buffered']
    #allocation6 [shape = 's32[1]{0}', space=sflag, size = 0x4, scoped, tag = 'scoped memory for tpu_custom_call.1']
    #allocation7 [shape = 'u8[4096]{0}', space=vmem, size = 0x1000, scoped, tag = 'output window, operand 0, single buffered']
    %8 = vsyncpa [#allocation3], 0
    %9 = vsyncpa [#allocation6], 0
    %10 = vsyncpa [#allocation4], 0
    // Predicated region
    $region2: #{tpu_custom_call.1} parent=1 // pred_check
      _
    $region3: #{tpu_custom_call.1} parent=1 // pred_check_branch
      %12 = sbr.rel (0) target = $region5
    $region4: #{tpu_custom_call.1} parent=1 // pred_region
      %s14 = ssub.s32 1024, 1024
      %15 = vsyncadd [#allocation3], %s14
      %s16 = sshll.u32 [#allocation2], 4
      %s17 = int_to_ptr.vmem [resolvable:$true] %s16
      %22 = dma.hbm_to_vmem [thread:$0]  %s0, 1024, %s17, [#allocation3], 64, 64, 4
    $region5: #{tpu_custom_call.1} parent=1 // pred_fallthru
      _
    // Predicated region
    $region6: #{tpu_custom_call.1} parent=1 // pred_check
      _
    $region7: #{tpu_custom_call.1} parent=1 // pred_check_branch
      %24 = sbr.rel (0) target = $region9
    $region8: #{tpu_custom_call.1} parent=1 // pred_region
      %s26 = ssub.s32 4096, 4096
      %27 = vsyncadd [#allocation6], %s26
      %s28 = sshll.u32 [#allocation5], 4
      %s29 = int_to_ptr.vmem [resolvable:$true] %s28
      %34 = dma.hbm_to_vmem [thread:$0]  %s1, 4096, %s29, [#allocation6], 64, 64, 4
    $region9: #{tpu_custom_call.1} parent=1 // pred_fallthru
      _
    // Predicated region
    $region10: #{tpu_custom_call.1} parent=1 // pred_check
      _
    $region11: #{tpu_custom_call.1} parent=1 // pred_check_branch
      %36 = sbr.rel (0) target = $region13
    $region12: #{tpu_custom_call.1} parent=1 // pred_region
      _
    $region13: #{tpu_custom_call.1} parent=1 // pred_fallthru
      _
    // Predicated region
    $region14: #{tpu_custom_call.1} parent=1 // pred_check
      _
    $region15: #{tpu_custom_call.1} parent=1 // pred_check_branch
      %38 = sbr.rel (0) target = $region17
    $region16: #{tpu_custom_call.1} parent=1 // pred_region
      %39 = dma.done [#allocation3], 1024
    $region17: #{tpu_custom_call.1} parent=1 // pred_fallthru
      _
    // Predicated region
    $region18: #{tpu_custom_call.1} parent=1 // pred_check
      _
    $region19: #{tpu_custom_call.1} parent=1 // pred_check_branch
      %41 = sbr.rel (0) target = $region21
    $region20: #{tpu_custom_call.1} parent=1 // pred_region
      %42 = dma.done [#allocation6], 4096
    $region21: #{tpu_custom_call.1} parent=1 // pred_fallthru
      _
    %v44 = vld [vmem:[%s2] sm:$0xf]
    %v45 = vld [vmem:[#allocation2] sm:$0xf]
    %v46 = vld [vmem:[#allocation2 + $0x4] sm:$0xf]
    %v47 = vld [vmem:[#allocation2 + $0x8] sm:$0xf]
    %v48 = vld [vmem:[#allocation2 + $0xc] sm:$0xf]
    %v49 = vld [vmem:[#allocation2 + $0x10] sm:$0xf]
    %v50 = vld [vmem:[#allocation2 + $0x14] sm:$0xf]
    %v51 = vld [vmem:[#allocation2 + $0x18] sm:$0xf]
    %v52 = vld [vmem:[#allocation2 + $0x1c] sm:$0xf]
    %v53 = vld [vmem:[#allocation2 + $0x20] sm:$0xf]
    %v54 = vld [vmem:[#allocation2 + $0x24] sm:$0xf]
    %v55 = vld [vmem:[#allocation2 + $0x28] sm:$0xf]
    %v56 = vld [vmem:[#allocation2 + $0x2c] sm:$0xf]
    %v57 = vld [vmem:[#allocation2 + $0x30] sm:$0xf]
    %v58 = vld [vmem:[#allocation2 + $0x34] sm:$0xf]
    %v59 = vld [vmem:[#allocation2 + $0x38] sm:$0xf]
    %v60 = vld [vmem:[#allocation2 + $0x3c] sm:$0xf]
    %v61 = vld [vmem:[#allocation5] sm:$0xf]
    %v62 = vld [vmem:[#allocation5 + $0x4] sm:$0xf]
    %v63 = vld [vmem:[#allocation5 + $0x8] sm:$0xf]
    %v64 = vld [vmem:[#allocation5 + $0xc] sm:$0xf]
    %v65 = vld [vmem:[#allocation5 + $0x10] sm:$0xf]
    %v66 = vld [vmem:[#allocation5 + $0x14] sm:$0xf]
    %v67 = vld [vmem:[#allocation5 + $0x18] sm:$0xf]
    %v68 = vld [vmem:[#allocation5 + $0x1c] sm:$0xf]
    %v69 = vld [vmem:[#allocation5 + $0x20] sm:$0xf]
    %v70 = vld [vmem:[#allocation5 + $0x24] sm:$0xf]
    %v71 = vld [vmem:[#allocation5 + $0x28] sm:$0xf]
    %v72 = vld [vmem:[#allocation5 + $0x2c] sm:$0xf]
    %v73 = vld [vmem:[#allocation5 + $0x30] sm:$0xf]
    %v74 = vld [vmem:[#allocation5 + $0x34] sm:$0xf]
    %v75 = vld [vmem:[#allocation5 + $0x38] sm:$0xf]
    %v76 = vld [vmem:[#allocation5 + $0x3c] sm:$0xf]
    %v77 = vlaneseq
    %v78 = vshrl.u32 %v77, 7
    %v79 = vsub.s32 0, %v78
    %v80 = vrot.slane %v44, %v79
    %v97 = vunpack.c.l.b16 %v45
    %v98 = vunpack.c.l.b16 %v46
    %v99 = vunpack.c.l.b16 %v47
    %v100 = vunpack.c.l.b16 %v48
    %v101 = vunpack.c.l.b16 %v49
    %v102 = vunpack.c.l.b16 %v50
    %v103 = vunpack.c.l.b16 %v51
    %v104 = vunpack.c.l.b16 %v52
    %v105 = vunpack.c.l.b16 %v53
    %v106 = vunpack.c.l.b16 %v54
    %v107 = vunpack.c.l.b16 %v55
    %v108 = vunpack.c.l.b16 %v56
    %v109 = vunpack.c.l.b16 %v57
    %v110 = vunpack.c.l.b16 %v58
    %v111 = vunpack.c.l.b16 %v59
    %v112 = vunpack.c.l.b16 %v60
    %v113 = vpack.c.b16 %v98, %v97
    %v114 = vpack.c.b16 %v100, %v99
    %v115 = vpack.c.b16 %v102, %v101
    %v116 = vpack.c.b16 %v104, %v103
    %v117 = vpack.c.b16 %v106, %v105
    %v118 = vpack.c.b16 %v108, %v107
    %v119 = vpack.c.b16 %v110, %v109
    %v120 = vpack.c.b16 %v112, %v111
    %v145 = vunpack.c.l.b16 %v61
    %v146 = vunpack.c.l.b16 %v62
    %v147 = vunpack.c.l.b16 %v63
    %v148 = vunpack.c.l.b16 %v64
    %v149 = vunpack.c.l.b16 %v65
    %v150 = vunpack.c.l.b16 %v66
    %v151 = vunpack.c.l.b16 %v67
    %v152 = vunpack.c.l.b16 %v68
    %v153 = vunpack.c.l.b16 %v69
    %v154 = vunpack.c.l.b16 %v70
    %v155 = vunpack.c.l.b16 %v71
    %v156 = vunpack.c.l.b16 %v72
    %v157 = vunpack.c.l.b16 %v73
    %v158 = vunpack.c.l.b16 %v74
    %v159 = vunpack.c.l.b16 %v75
    %v160 = vunpack.c.l.b16 %v76
    %v161 = vpack.c.b16 %v146, %v145
    %v162 = vpack.c.b16 %v148, %v147
    %v163 = vpack.c.b16 %v150, %v149
    %v164 = vpack.c.b16 %v152, %v151
    %v165 = vpack.c.b16 %v154, %v153
    %v166 = vpack.c.b16 %v156, %v155
    %v167 = vpack.c.b16 %v158, %v157
    %v168 = vpack.c.b16 %v160, %v159
    %177 = vmatprep.subr.bf16.mxu0 0
    %178 = vmatpush1.bf16.msra.mxu0 %v161
    %179 = vmatprep.subr.bf16.mxu0 0
    %180 = vmatpush1.bf16.msra.mxu0 %v162
    %181 = vmatprep.subr.bf16.mxu0 0
    %182 = vmatpush1.bf16.msra.mxu0 %v163
    %183 = vmatprep.subr.bf16.mxu0 0
    %184 = vmatpush1.bf16.msra.mxu0 %v164
    %185 = vmatprep.subr.bf16.mxu0 0
    %186 = vmatpush1.bf16.msra.mxu0 %v165
    %187 = vmatprep.subr.bf16.mxu0 0
    %188 = vmatpush1.bf16.msra.mxu0 %v166
    %189 = vmatprep.subr.bf16.mxu0 0
    %190 = vmatpush1.bf16.msra.mxu0 %v167
    %191 = vmatprep.subr.bf16.mxu0 0
    %192 = vmatpush1.bf16.msra.mxu0 %v168
    %193 = vmatprep.subr.bf16.mxu0 0
    %194 = vmatpush1.bf16.msra.mxu0 0
    %195 = vmatprep.subr.bf16.mxu0 0
    %196 = vmatpush1.bf16.msra.mxu0 0
    %197 = vmatprep.subr.bf16.mxu0 0
    %198 = vmatpush1.bf16.msra.mxu0 0
    %199 = vmatprep.subr.bf16.mxu0 0
    %200 = vmatpush1.bf16.msra.mxu0 0
    %201 = vmatprep.subr.bf16.mxu0 0
    %202 = vmatpush1.bf16.msra.mxu0 0
    %203 = vmatprep.subr.bf16.mxu0 0
    %204 = vmatpush1.bf16.msra.mxu0 0
    %205 = vmatprep.subr.bf16.mxu0 0
    %206 = vmatpush1.bf16.msra.mxu0 0
    %207 = vmatprep.subr.bf16.mxu0 0
    %208 = vmatpush1.bf16.msra.mxu0 0
    %209 = vmatprep.mubr.bf16.mxu0 0
    %210 = vmatmul.mubr.bf16.gmra.mrb[0].mxu0 %v113
    %v211 = vpop.f32.mrb[0].mxu0
    %v212 = vadd.f32 %v80, %v211
    %v213 = vpop.f32.mrb[0].mxu0
    %v214 = vpop.f32.mrb[0].mxu0
    %v215 = vadd.f32 %v80, %v214
    %v216 = vpop.f32.mrb[0].mxu0
    %217 = vmatprep.mubr.bf16.mxu0 0
    %218 = vmatmul.mubr.bf16.gmra.mrb[0].mxu0 %v114
    %v219 = vpop.f32.mrb[0].mxu0
    %v220 = vadd.f32 %v80, %v219
    %v221 = vpop.f32.mrb[0].mxu0
    %v222 = vpop.f32.mrb[0].mxu0
    %v223 = vadd.f32 %v80, %v222
    %v224 = vpop.f32.mrb[0].mxu0
    %225 = vmatprep.mubr.bf16.mxu0 0
    %226 = vmatmul.mubr.bf16.gmra.mrb[0].mxu0 %v115
    %v227 = vpop.f32.mrb[0].mxu0
    %v228 = vadd.f32 %v80, %v227
    %v229 = vpop.f32.mrb[0].mxu0
    %v230 = vpop.f32.mrb[0].mxu0
    %v231 = vadd.f32 %v80, %v230
    %v232 = vpop.f32.mrb[0].mxu0
    %233 = vmatprep.mubr.bf16.mxu0 0
    %234 = vmatmul.mubr.bf16.gmra.mrb[0].mxu0 %v116
    %v235 = vpop.f32.mrb[0].mxu0
    %v236 = vadd.f32 %v80, %v235
    %v237 = vpop.f32.mrb[0].mxu0
    %v238 = vpop.f32.mrb[0].mxu0
    %v239 = vadd.f32 %v80, %v238
    %v240 = vpop.f32.mrb[0].mxu0
    %241 = vmatprep.mubr.bf16.mxu0 0
    %242 = vmatmul.mubr.bf16.gmra.mrb[0].mxu0 %v117
    %v243 = vpop.f32.mrb[0].mxu0
    %v244 = vadd.f32 %v80, %v243
    %v245 = vpop.f32.mrb[0].mxu0
    %v246 = vpop.f32.mrb[0].mxu0
    %v247 = vadd.f32 %v80, %v246
    %v248 = vpop.f32.mrb[0].mxu0
    %249 = vmatprep.mubr.bf16.mxu0 0
    %250 = vmatmul.mubr.bf16.gmra.mrb[0].mxu0 %v118
    %v251 = vpop.f32.mrb[0].mxu0
    %v252 = vadd.f32 %v80, %v251
    %v253 = vpop.f32.mrb[0].mxu0
    %v254 = vpop.f32.mrb[0].mxu0
    %v255 = vadd.f32 %v80, %v254
    %v256 = vpop.f32.mrb[0].mxu0
    %257 = vmatprep.mubr.bf16.mxu0 0
    %258 = vmatmul.mubr.bf16.gmra.mrb[0].mxu0 %v119
    %v259 = vpop.f32.mrb[0].mxu0
    %v260 = vadd.f32 %v80, %v259
    %v261 = vpop.f32.mrb[0].mxu0
    %v262 = vpop.f32.mrb[0].mxu0
    %v263 = vadd.f32 %v80, %v262
    %v264 = vpop.f32.mrb[0].mxu0
    %265 = vmatprep.mubr.bf16.mxu0 0
    %266 = vmatmul.mubr.bf16.gmra.mrb[0].mxu0 %v120
    %v267 = vpop.f32.mrb[0].mxu0
    %v268 = vadd.f32 %v80, %v267
    %v269 = vpop.f32.mrb[0].mxu0
    %v270 = vpop.f32.mrb[0].mxu0
    %v271 = vadd.f32 %v80, %v270
    %v272 = vpop.f32.mrb[0].mxu0
    %273 = vdwg.mxu0
    %v274 = vmax.f32 %v212, 0.0
    %v275 = vmax.f32 %v215, 0.0
    %v276 = vmax.f32 %v220, 0.0
    %v277 = vmax.f32 %v223, 0.0
    %v278 = vmax.f32 %v228, 0.0
    %v279 = vmax.f32 %v231, 0.0
    %v280 = vmax.f32 %v236, 0.0
    %v281 = vmax.f32 %v239, 0.0
    %v282 = vmax.f32 %v244, 0.0
    %v283 = vmax.f32 %v247, 0.0
    %v284 = vmax.f32 %v252, 0.0
    %v285 = vmax.f32 %v255, 0.0
    %v286 = vmax.f32 %v260, 0.0
    %v287 = vmax.f32 %v263, 0.0
    %v288 = vmax.f32 %v268, 0.0
    %v289 = vmax.f32 %v271, 0.0
    %v290 = vpack.c.bf16 %v275, %v274
    %v291 = vpack.c.bf16 %v277, %v276
    %v292 = vpack.c.bf16 %v279, %v278
    %v293 = vpack.c.bf16 %v281, %v280
    %v294 = vpack.c.bf16 %v283, %v282
    %v295 = vpack.c.bf16 %v285, %v284
    %v296 = vpack.c.bf16 %v287, %v286
    %v297 = vpack.c.bf16 %v289, %v288
    %s298 = scalar_lea.vmem [#allocation5], 64
    %v299 = vld [vmem:[%s298] sm:$0xf]
    %v300 = vld [vmem:[%s298 + $0x4] sm:$0xf]
    %v301 = vld [vmem:[%s298 + $0x8] sm:$0xf]
    %v302 = vld [vmem:[%s298 + $0xc] sm:$0xf]
    %v303 = vld [vmem:[%s298 + $0x10] sm:$0xf]
    %v304 = vld [vmem:[%s298 + $0x14] sm:$0xf]
    %v305 = vld [vmem:[%s298 + $0x18] sm:$0xf]
    %v306 = vld [vmem:[%s298 + $0x1c] sm:$0xf]
    %v307 = vld [vmem:[%s298 + $0x20] sm:$0xf]
    %v308 = vld [vmem:[%s298 + $0x24] sm:$0xf]
    %v309 = vld [vmem:[%s298 + $0x28] sm:$0xf]
    %v310 = vld [vmem:[%s298 + $0x2c] sm:$0xf]
    %v311 = vld [vmem:[%s298 + $0x30] sm:$0xf]
    %v312 = vld [vmem:[%s298 + $0x34] sm:$0xf]
    %v313 = vld [vmem:[%s298 + $0x38] sm:$0xf]
    %v314 = vld [vmem:[%s298 + $0x3c] sm:$0xf]
    %v315 = vlaneseq
    %v316 = vshrl.u32 %v315, 7
    %v317 = vsub.s32 1, %v316
    %v318 = vrot.slane %v44, %v317
    %v335 = vunpack.c.l.b16 %v299
    %v336 = vunpack.c.l.b16 %v300
    %v337 = vunpack.c.l.b16 %v301
    %v338 = vunpack.c.l.b16 %v302
    %v339 = vunpack.c.l.b16 %v303
    %v340 = vunpack.c.l.b16 %v304
    %v341 = vunpack.c.l.b16 %v305
    %v342 = vunpack.c.l.b16 %v306
    %v343 = vunpack.c.l.b16 %v307
    %v344 = vunpack.c.l.b16 %v308
    %v345 = vunpack.c.l.b16 %v309
    %v346 = vunpack.c.l.b16 %v310
    %v347 = vunpack.c.l.b16 %v311
    %v348 = vunpack.c.l.b16 %v312
    %v349 = vunpack.c.l.b16 %v313
    %v350 = vunpack.c.l.b16 %v314
    %v351 = vpack.c.b16 %v336, %v335
    %v352 = vpack.c.b16 %v338, %v337
    %v353 = vpack.c.b16 %v340, %v339
    %v354 = vpack.c.b16 %v342, %v341
    %v355 = vpack.c.b16 %v344, %v343
    %v356 = vpack.c.b16 %v346, %v345
    %v357 = vpack.c.b16 %v348, %v347
    %v358 = vpack.c.b16 %v350, %v349
    %367 = vmatprep.subr.bf16.mxu0 0
    %368 = vmatpush1.bf16.msra.mxu0 %v351
    %369 = vmatprep.subr.bf16.mxu0 0
    %370 = vmatpush1.bf16.msra.mxu0 %v352
    %371 = vmatprep.subr.bf16.mxu0 0
    %372 = vmatpush1.bf16.msra.mxu0 %v353
    %373 = vmatprep.subr.bf16.mxu0 0
    %374 = vmatpush1.bf16.msra.mxu0 %v354
    %375 = vmatprep.subr.bf16.mxu0 0
    %376 = vmatpush1.bf16.msra.mxu0 %v355
    %377 = vmatprep.subr.bf16.mxu0 0
    %378 = vmatpush1.bf16.msra.mxu0 %v356
    %379 = vmatprep.subr.bf16.mxu0 0
    %380 = vmatpush1.bf16.msra.mxu0 %v357
    %381 = vmatprep.subr.bf16.mxu0 0
    %382 = vmatpush1.bf16.msra.mxu0 %v358
    %383 = vmatprep.subr.bf16.mxu0 0
    %384 = vmatpush1.bf16.msra.mxu0 0
    %385 = vmatprep.subr.bf16.mxu0 0
    %386 = vmatpush1.bf16.msra.mxu0 0
    %387 = vmatprep.subr.bf16.mxu0 0
    %388 = vmatpush1.bf16.msra.mxu0 0
    %389 = vmatprep.subr.bf16.mxu0 0
    %390 = vmatpush1.bf16.msra.mxu0 0
    %391 = vmatprep.subr.bf16.mxu0 0
    %392 = vmatpush1.bf16.msra.mxu0 0
    %393 = vmatprep.subr.bf16.mxu0 0
    %394 = vmatpush1.bf16.msra.mxu0 0
    %395 = vmatprep.subr.bf16.mxu0 0
    %396 = vmatpush1.bf16.msra.mxu0 0
    %397 = vmatprep.subr.bf16.mxu0 0
    %398 = vmatpush1.bf16.msra.mxu0 0
    %399 = vmatprep.mubr.bf16.mxu0 0
    %400 = vmatmul.mubr.bf16.gmra.mrb[0].mxu0 %v290
    %v401 = vpop.f32.mrb[0].mxu0
    %v402 = vadd.f32 %v318, %v401
    %v403 = vpop.f32.mrb[0].mxu0
    %v404 = vpop.f32.mrb[0].mxu0
    %v405 = vadd.f32 %v318, %v404
    %v406 = vpop.f32.mrb[0].mxu0
    %407 = vmatprep.mubr.bf16.mxu0 0
    %408 = vmatmul.mubr.bf16.gmra.mrb[0].mxu0 %v291
    %v409 = vpop.f32.mrb[0].mxu0
    %v410 = vadd.f32 %v318, %v409
    %v411 = vpop.f32.mrb[0].mxu0
    %v412 = vpop.f32.mrb[0].mxu0
    %v413 = vadd.f32 %v318, %v412
    %v414 = vpop.f32.mrb[0].mxu0
    %415 = vmatprep.mubr.bf16.mxu0 0
    %416 = vmatmul.mubr.bf16.gmra.mrb[0].mxu0 %v292
    %v417 = vpop.f32.mrb[0].mxu0
    %v418 = vadd.f32 %v318, %v417
    %v419 = vpop.f32.mrb[0].mxu0
    %v420 = vpop.f32.mrb[0].mxu0
    %v421 = vadd.f32 %v318, %v420
    %v422 = vpop.f32.mrb[0].mxu0
    %423 = vmatprep.mubr.bf16.mxu0 0
    %424 = vmatmul.mubr.bf16.gmra.mrb[0].mxu0 %v293
    %v425 = vpop.f32.mrb[0].mxu0
    %v426 = vadd.f32 %v318, %v425
    %v427 = vpop.f32.mrb[0].mxu0
    %v428 = vpop.f32.mrb[0].mxu0
    %v429 = vadd.f32 %v318, %v428
    %v430 = vpop.f32.mrb[0].mxu0
    %431 = vmatprep.mubr.bf16.mxu0 0
    %432 = vmatmul.mubr.bf16.gmra.mrb[0].mxu0 %v294
    %v433 = vpop.f32.mrb[0].mxu0
    %v434 = vadd.f32 %v318, %v433
    %v435 = vpop.f32.mrb[0].mxu0
    %v436 = vpop.f32.mrb[0].mxu0
    %v437 = vadd.f32 %v318, %v436
    %v438 = vpop.f32.mrb[0].mxu0
    %439 = vmatprep.mubr.bf16.mxu0 0
    %440 = vmatmul.mubr.bf16.gmra.mrb[0].mxu0 %v295
    %v441 = vpop.f32.mrb[0].mxu0
    %v442 = vadd.f32 %v318, %v441
    %v443 = vpop.f32.mrb[0].mxu0
    %v444 = vpop.f32.mrb[0].mxu0
    %v445 = vadd.f32 %v318, %v444
    %v446 = vpop.f32.mrb[0].mxu0
    %447 = vmatprep.mubr.bf16.mxu0 0
    %448 = vmatmul.mubr.bf16.gmra.mrb[0].mxu0 %v296
    %v449 = vpop.f32.mrb[0].mxu0
    %v450 = vadd.f32 %v318, %v449
    %v451 = vpop.f32.mrb[0].mxu0
    %v452 = vpop.f32.mrb[0].mxu0
    %v453 = vadd.f32 %v318, %v452
    %v454 = vpop.f32.mrb[0].mxu0
    %455 = vmatprep.mubr.bf16.mxu0 0
    %456 = vmatmul.mubr.bf16.gmra.mrb[0].mxu0 %v297
    %v457 = vpop.f32.mrb[0].mxu0
    %v458 = vadd.f32 %v318, %v457
    %v459 = vpop.f32.mrb[0].mxu0
    %v460 = vpop.f32.mrb[0].mxu0
    %v461 = vadd.f32 %v318, %v460
    %v462 = vpop.f32.mrb[0].mxu0
    %463 = vdwg.mxu0
    %v464 = vmax.f32 %v402, 0.0
    %v465 = vmax.f32 %v405, 0.0
    %v466 = vmax.f32 %v410, 0.0
    %v467 = vmax.f32 %v413, 0.0
    %v468 = vmax.f32 %v418, 0.0
    %v469 = vmax.f32 %v421, 0.0
    %v470 = vmax.f32 %v426, 0.0
    %v471 = vmax.f32 %v429, 0.0
    %v472 = vmax.f32 %v434, 0.0
    %v473 = vmax.f32 %v437, 0.0
    %v474 = vmax.f32 %v442, 0.0
    %v475 = vmax.f32 %v445, 0.0
    %v476 = vmax.f32 %v450, 0.0
    %v477 = vmax.f32 %v453, 0.0
    %v478 = vmax.f32 %v458, 0.0
    %v479 = vmax.f32 %v461, 0.0
    %v480 = vpack.c.bf16 %v465, %v464
    %v481 = vpack.c.bf16 %v467, %v466
    %v482 = vpack.c.bf16 %v469, %v468
    %v483 = vpack.c.bf16 %v471, %v470
    %v484 = vpack.c.bf16 %v473, %v472
    %v485 = vpack.c.bf16 %v475, %v474
    %v486 = vpack.c.bf16 %v477, %v476
    %v487 = vpack.c.bf16 %v479, %v478
    %s488 = scalar_lea.vmem [#allocation5], 128
    %v489 = vld [vmem:[%s488] sm:$0xf]
    %v490 = vld [vmem:[%s488 + $0x4] sm:$0xf]
    %v491 = vld [vmem:[%s488 + $0x8] sm:$0xf]
    %v492 = vld [vmem:[%s488 + $0xc] sm:$0xf]
    %v493 = vld [vmem:[%s488 + $0x10] sm:$0xf]
    %v494 = vld [vmem:[%s488 + $0x14] sm:$0xf]
    %v495 = vld [vmem:[%s488 + $0x18] sm:$0xf]
    %v496 = vld [vmem:[%s488 + $0x1c] sm:$0xf]
    %v497 = vld [vmem:[%s488 + $0x20] sm:$0xf]
    %v498 = vld [vmem:[%s488 + $0x24] sm:$0xf]
    %v499 = vld [vmem:[%s488 + $0x28] sm:$0xf]
    %v500 = vld [vmem:[%s488 + $0x2c] sm:$0xf]
    %v501 = vld [vmem:[%s488 + $0x30] sm:$0xf]
    %v502 = vld [vmem:[%s488 + $0x34] sm:$0xf]
    %v503 = vld [vmem:[%s488 + $0x38] sm:$0xf]
    %v504 = vld [vmem:[%s488 + $0x3c] sm:$0xf]
    %v505 = vlaneseq
    %v506 = vshrl.u32 %v505, 7
    %v507 = vsub.s32 2, %v506
    %v508 = vrot.slane %v44, %v507
    %v525 = vunpack.c.l.b16 %v489
    %v526 = vunpack.c.l.b16 %v490
    %v527 = vunpack.c.l.b16 %v491
    %v528 = vunpack.c.l.b16 %v492
    %v529 = vunpack.c.l.b16 %v493
    %v530 = vunpack.c.l.b16 %v494
    %v531 = vunpack.c.l.b16 %v495
    %v532 = vunpack.c.l.b16 %v496
    %v533 = vunpack.c.l.b16 %v497
    %v534 = vunpack.c.l.b16 %v498
    %v535 = vunpack.c.l.b16 %v499
    %v536 = vunpack.c.l.b16 %v500
    %v537 = vunpack.c.l.b16 %v501
    %v538 = vunpack.c.l.b16 %v502
    %v539 = vunpack.c.l.b16 %v503
    %v540 = vunpack.c.l.b16 %v504
    %v541 = vpack.c.b16 %v526, %v525
    %v542 = vpack.c.b16 %v528, %v527
    %v543 = vpack.c.b16 %v530, %v529
    %v544 = vpack.c.b16 %v532, %v531
    %v545 = vpack.c.b16 %v534, %v533
    %v546 = vpack.c.b16 %v536, %v535
    %v547 = vpack.c.b16 %v538, %v537
    %v548 = vpack.c.b16 %v540, %v539
    %557 = vmatprep.subr.bf16.mxu0 0
    %558 = vmatpush1.bf16.msra.mxu0 %v541
    %559 = vmatprep.subr.bf16.mxu0 0
    %560 = vmatpush1.bf16.msra.mxu0 %v542
    %561 = vmatprep.subr.bf16.mxu0 0
    %562 = vmatpush1.bf16.msra.mxu0 %v543
    %563 = vmatprep.subr.bf16.mxu0 0
    %564 = vmatpush1.bf16.msra.mxu0 %v544
    %565 = vmatprep.subr.bf16.mxu0 0
    %566 = vmatpush1.bf16.msra.mxu0 %v545
    %567 = vmatprep.subr.bf16.mxu0 0
    %568 = vmatpush1.bf16.msra.mxu0 %v546
    %569 = vmatprep.subr.bf16.mxu0 0
    %570 = vmatpush1.bf16.msra.mxu0 %v547
    %571 = vmatprep.subr.bf16.mxu0 0
    %572 = vmatpush1.bf16.msra.mxu0 %v548
    %573 = vmatprep.subr.bf16.mxu0 0
    %574 = vmatpush1.bf16.msra.mxu0 0
    %575 = vmatprep.subr.bf16.mxu0 0
    %576 = vmatpush1.bf16.msra.mxu0 0
    %577 = vmatprep.subr.bf16.mxu0 0
    %578 = vmatpush1.bf16.msra.mxu0 0
    %579 = vmatprep.subr.bf16.mxu0 0
    %580 = vmatpush1.bf16.msra.mxu0 0
    %581 = vmatprep.subr.bf16.mxu0 0
    %582 = vmatpush1.bf16.msra.mxu0 0
    %583 = vmatprep.subr.bf16.mxu0 0
    %584 = vmatpush1.bf16.msra.mxu0 0
    %585 = vmatprep.subr.bf16.mxu0 0
    %586 = vmatpush1.bf16.msra.mxu0 0
    %587 = vmatprep.subr.bf16.mxu0 0
    %588 = vmatpush1.bf16.msra.mxu0 0
    %589 = vmatprep.mubr.bf16.mxu0 0
    %590 = vmatmul.mubr.bf16.gmra.mrb[0].mxu0 %v480
    %v591 = vpop.f32.mrb[0].mxu0
    %v592 = vadd.f32 %v508, %v591
    %v593 = vpop.f32.mrb[0].mxu0
    %v594 = vpop.f32.mrb[0].mxu0
    %v595 = vadd.f32 %v508, %v594
    %v596 = vpop.f32.mrb[0].mxu0
    %597 = vmatprep.mubr.bf16.mxu0 0
    %598 = vmatmul.mubr.bf16.gmra.mrb[0].mxu0 %v481
    %v599 = vpop.f32.mrb[0].mxu0
    %v600 = vadd.f32 %v508, %v599
    %v601 = vpop.f32.mrb[0].mxu0
    %v602 = vpop.f32.mrb[0].mxu0
    %v603 = vadd.f32 %v508, %v602
    %v604 = vpop.f32.mrb[0].mxu0
    %605 = vmatprep.mubr.bf16.mxu0 0
    %606 = vmatmul.mubr.bf16.gmra.mrb[0].mxu0 %v482
    %v607 = vpop.f32.mrb[0].mxu0
    %v608 = vadd.f32 %v508, %v607
    %v609 = vpop.f32.mrb[0].mxu0
    %v610 = vpop.f32.mrb[0].mxu0
    %v611 = vadd.f32 %v508, %v610
    %v612 = vpop.f32.mrb[0].mxu0
    %613 = vmatprep.mubr.bf16.mxu0 0
    %614 = vmatmul.mubr.bf16.gmra.mrb[0].mxu0 %v483
    %v615 = vpop.f32.mrb[0].mxu0
    %v616 = vadd.f32 %v508, %v615
    %v617 = vpop.f32.mrb[0].mxu0
    %v618 = vpop.f32.mrb[0].mxu0
    %v619 = vadd.f32 %v508, %v618
    %v620 = vpop.f32.mrb[0].mxu0
    %621 = vmatprep.mubr.bf16.mxu0 0
    %622 = vmatmul.mubr.bf16.gmra.mrb[0].mxu0 %v484
    %v623 = vpop.f32.mrb[0].mxu0
    %v624 = vadd.f32 %v508, %v623
    %v625 = vpop.f32.mrb[0].mxu0
    %v626 = vpop.f32.mrb[0].mxu0
    %v627 = vadd.f32 %v508, %v626
    %v628 = vpop.f32.mrb[0].mxu0
    %629 = vmatprep.mubr.bf16.mxu0 0
    %630 = vmatmul.mubr.bf16.gmra.mrb[0].mxu0 %v485
    %v631 = vpop.f32.mrb[0].mxu0
    %v632 = vadd.f32 %v508, %v631
    %v633 = vpop.f32.mrb[0].mxu0
    %v634 = vpop.f32.mrb[0].mxu0
    %v635 = vadd.f32 %v508, %v634
    %v636 = vpop.f32.mrb[0].mxu0
    %637 = vmatprep.mubr.bf16.mxu0 0
    %638 = vmatmul.mubr.bf16.gmra.mrb[0].mxu0 %v486
    %v639 = vpop.f32.mrb[0].mxu0
    %v640 = vadd.f32 %v508, %v639
    %v641 = vpop.f32.mrb[0].mxu0
    %v642 = vpop.f32.mrb[0].mxu0
    %v643 = vadd.f32 %v508, %v642
    %v644 = vpop.f32.mrb[0].mxu0
    %645 = vmatprep.mubr.bf16.mxu0 0
    %646 = vmatmul.mubr.bf16.gmra.mrb[0].mxu0 %v487
    %v647 = vpop.f32.mrb[0].mxu0
    %v648 = vadd.f32 %v508, %v647
    %v649 = vpop.f32.mrb[0].mxu0
    %v650 = vpop.f32.mrb[0].mxu0
    %v651 = vadd.f32 %v508, %v650
    %v652 = vpop.f32.mrb[0].mxu0
    %653 = vdwg.mxu0
    %v654 = vmax.f32 %v592, 0.0
    %v655 = vmax.f32 %v595, 0.0
    %v656 = vmax.f32 %v600, 0.0
    %v657 = vmax.f32 %v603, 0.0
    %v658 = vmax.f32 %v608, 0.0
    %v659 = vmax.f32 %v611, 0.0
    %v660 = vmax.f32 %v616, 0.0
    %v661 = vmax.f32 %v619, 0.0
    %v662 = vmax.f32 %v624, 0.0
    %v663 = vmax.f32 %v627, 0.0
    %v664 = vmax.f32 %v632, 0.0
    %v665 = vmax.f32 %v635, 0.0
    %v666 = vmax.f32 %v640, 0.0
    %v667 = vmax.f32 %v643, 0.0
    %v668 = vmax.f32 %v648, 0.0
    %v669 = vmax.f32 %v651, 0.0
    %v670 = vpack.c.bf16 %v655, %v654
    %v671 = vpack.c.bf16 %v657, %v656
    %v672 = vpack.c.bf16 %v659, %v658
    %v673 = vpack.c.bf16 %v661, %v660
    %v674 = vpack.c.bf16 %v663, %v662
    %v675 = vpack.c.bf16 %v665, %v664
    %v676 = vpack.c.bf16 %v667, %v666
    %v677 = vpack.c.bf16 %v669, %v668
    %s678 = scalar_lea.vmem [#allocation5], 192
    %v679 = vld [vmem:[%s678] sm:$0xf]
    %v680 = vld [vmem:[%s678 + $0x4] sm:$0xf]
    %v681 = vld [vmem:[%s678 + $0x8] sm:$0xf]
    %v682 = vld [vmem:[%s678 + $0xc] sm:$0xf]
    %v683 = vld [vmem:[%s678 + $0x10] sm:$0xf]
    %v684 = vld [vmem:[%s678 + $0x14] sm:$0xf]
    %v685 = vld [vmem:[%s678 + $0x18] sm:$0xf]
    %v686 = vld [vmem:[%s678 + $0x1c] sm:$0xf]
    %v687 = vld [vmem:[%s678 + $0x20] sm:$0xf]
    %v688 = vld [vmem:[%s678 + $0x24] sm:$0xf]
    %v689 = vld [vmem:[%s678 + $0x28] sm:$0xf]
    %v690 = vld [vmem:[%s678 + $0x2c] sm:$0xf]
    %v691 = vld [vmem:[%s678 + $0x30] sm:$0xf]
    %v692 = vld [vmem:[%s678 + $0x34] sm:$0xf]
    %v693 = vld [vmem:[%s678 + $0x38] sm:$0xf]
    %v694 = vld [vmem:[%s678 + $0x3c] sm:$0xf]
    %v695 = vlaneseq
    %v696 = vshrl.u32 %v695, 7
    %v697 = vsub.s32 3, %v696
    %v698 = vrot.slane %v44, %v697
    %v715 = vunpack.c.l.b16 %v679
    %v716 = vunpack.c.l.b16 %v680
    %v717 = vunpack.c.l.b16 %v681
    %v718 = vunpack.c.l.b16 %v682
    %v719 = vunpack.c.l.b16 %v683
    %v720 = vunpack.c.l.b16 %v684
    %v721 = vunpack.c.l.b16 %v685
    %v722 = vunpack.c.l.b16 %v686
    %v723 = vunpack.c.l.b16 %v687
    %v724 = vunpack.c.l.b16 %v688
    %v725 = vunpack.c.l.b16 %v689
    %v726 = vunpack.c.l.b16 %v690
    %v727 = vunpack.c.l.b16 %v691
    %v728 = vunpack.c.l.b16 %v692
    %v729 = vunpack.c.l.b16 %v693
    %v730 = vunpack.c.l.b16 %v694
    %v731 = vpack.c.b16 %v716, %v715
    %v732 = vpack.c.b16 %v718, %v717
    %v733 = vpack.c.b16 %v720, %v719
    %v734 = vpack.c.b16 %v722, %v721
    %v735 = vpack.c.b16 %v724, %v723
    %v736 = vpack.c.b16 %v726, %v725
    %v737 = vpack.c.b16 %v728, %v727
    %v738 = vpack.c.b16 %v730, %v729
    %747 = vmatprep.subr.bf16.mxu0 0
    %748 = vmatpush1.bf16.msra.mxu0 %v731
    %749 = vmatprep.subr.bf16.mxu0 0
    %750 = vmatpush1.bf16.msra.mxu0 %v732
    %751 = vmatprep.subr.bf16.mxu0 0
    %752 = vmatpush1.bf16.msra.mxu0 %v733
    %753 = vmatprep.subr.bf16.mxu0 0
    %754 = vmatpush1.bf16.msra.mxu0 %v734
    %755 = vmatprep.subr.bf16.mxu0 0
    %756 = vmatpush1.bf16.msra.mxu0 %v735
    %757 = vmatprep.subr.bf16.mxu0 0
    %758 = vmatpush1.bf16.msra.mxu0 %v736
    %759 = vmatprep.subr.bf16.mxu0 0
    %760 = vmatpush1.bf16.msra.mxu0 %v737
    %761 = vmatprep.subr.bf16.mxu0 0
    %762 = vmatpush1.bf16.msra.mxu0 %v738
    %763 = vmatprep.subr.bf16.mxu0 0
    %764 = vmatpush1.bf16.msra.mxu0 0
    %765 = vmatprep.subr.bf16.mxu0 0
    %766 = vmatpush1.bf16.msra.mxu0 0
    %767 = vmatprep.subr.bf16.mxu0 0
    %768 = vmatpush1.bf16.msra.mxu0 0
    %769 = vmatprep.subr.bf16.mxu0 0
    %770 = vmatpush1.bf16.msra.mxu0 0
    %771 = vmatprep.subr.bf16.mxu0 0
    %772 = vmatpush1.bf16.msra.mxu0 0
    %773 = vmatprep.subr.bf16.mxu0 0
    %774 = vmatpush1.bf16.msra.mxu0 0
    %775 = vmatprep.subr.bf16.mxu0 0
    %776 = vmatpush1.bf16.msra.mxu0 0
    %777 = vmatprep.subr.bf16.mxu0 0
    %778 = vmatpush1.bf16.msra.mxu0 0
    %779 = vmatprep.mubr.bf16.mxu0 0
    %780 = vmatmul.mubr.bf16.gmra.mrb[0].mxu0 %v670
    %v781 = vpop.f32.mrb[0].mxu0
    %v782 = vadd.f32 %v698, %v781
    %v783 = vpop.f32.mrb[0].mxu0
    %v784 = vpop.f32.mrb[0].mxu0
    %v785 = vadd.f32 %v698, %v784
    %v786 = vpop.f32.mrb[0].mxu0
    %787 = vmatprep.mubr.bf16.mxu0 0
    %788 = vmatmul.mubr.bf16.gmra.mrb[0].mxu0 %v671
    %v789 = vpop.f32.mrb[0].mxu0
    %v790 = vadd.f32 %v698, %v789
    %v791 = vpop.f32.mrb[0].mxu0
    %v792 = vpop.f32.mrb[0].mxu0
    %v793 = vadd.f32 %v698, %v792
    %v794 = vpop.f32.mrb[0].mxu0
    %795 = vmatprep.mubr.bf16.mxu0 0
    %796 = vmatmul.mubr.bf16.gmra.mrb[0].mxu0 %v672
    %v797 = vpop.f32.mrb[0].mxu0
    %v798 = vadd.f32 %v698, %v797
    %v799 = vpop.f32.mrb[0].mxu0
    %v800 = vpop.f32.mrb[0].mxu0
    %v801 = vadd.f32 %v698, %v800
    %v802 = vpop.f32.mrb[0].mxu0
    %803 = vmatprep.mubr.bf16.mxu0 0
    %804 = vmatmul.mubr.bf16.gmra.mrb[0].mxu0 %v673
    %v805 = vpop.f32.mrb[0].mxu0
    %v806 = vadd.f32 %v698, %v805
    %v807 = vpop.f32.mrb[0].mxu0
    %v808 = vpop.f32.mrb[0].mxu0
    %v809 = vadd.f32 %v698, %v808
    %v810 = vpop.f32.mrb[0].mxu0
    %811 = vmatprep.mubr.bf16.mxu0 0
    %812 = vmatmul.mubr.bf16.gmra.mrb[0].mxu0 %v674
    %v813 = vpop.f32.mrb[0].mxu0
    %v814 = vadd.f32 %v698, %v813
    %v815 = vpop.f32.mrb[0].mxu0
    %v816 = vpop.f32.mrb[0].mxu0
    %v817 = vadd.f32 %v698, %v816
    %v818 = vpop.f32.mrb[0].mxu0
    %819 = vmatprep.mubr.bf16.mxu0 0
    %820 = vmatmul.mubr.bf16.gmra.mrb[0].mxu0 %v675
    %v821 = vpop.f32.mrb[0].mxu0
    %v822 = vadd.f32 %v698, %v821
    %v823 = vpop.f32.mrb[0].mxu0
    %v824 = vpop.f32.mrb[0].mxu0
    %v825 = vadd.f32 %v698, %v824
    %v826 = vpop.f32.mrb[0].mxu0
    %827 = vmatprep.mubr.bf16.mxu0 0
    %828 = vmatmul.mubr.bf16.gmra.mrb[0].mxu0 %v676
    %v829 = vpop.f32.mrb[0].mxu0
    %v830 = vadd.f32 %v698, %v829
    %v831 = vpop.f32.mrb[0].mxu0
    %v832 = vpop.f32.mrb[0].mxu0
    %v833 = vadd.f32 %v698, %v832
    %v834 = vpop.f32.mrb[0].mxu0
    %835 = vmatprep.mubr.bf16.mxu0 0
    %836 = vmatmul.mubr.bf16.gmra.mrb[0].mxu0 %v677
    %v837 = vpop.f32.mrb[0].mxu0
    %v838 = vadd.f32 %v698, %v837
    %v839 = vpop.f32.mrb[0].mxu0
    %v840 = vpop.f32.mrb[0].mxu0
    %v841 = vadd.f32 %v698, %v840
    %v842 = vpop.f32.mrb[0].mxu0
    %843 = vdwg.mxu0
    %844 = vxpose.xlu0.b32.start [1/16] %v782, 128
    %845 = vxpose.xlu0.b32.cont [2/16] %v785, 128
    %846 = vxpose.xlu0.b32.cont [3/16] %v790, 128
    %847 = vxpose.xlu0.b32.cont [4/16] %v793, 128
    %848 = vxpose.xlu0.b32.cont [5/16] %v798, 128
    %849 = vxpose.xlu0.b32.cont [6/16] %v801, 128
    %850 = vxpose.xlu0.b32.cont [7/16] %v806, 128
    %851 = vxpose.xlu0.b32.cont [8/16] %v809, 128
    %852 = vxpose.xlu0.b32.cont [9/16] %v814, 128
    %853 = vxpose.xlu0.b32.cont [10/16] %v817, 128
    %854 = vxpose.xlu0.b32.cont [11/16] %v822, 128
    %855 = vxpose.xlu0.b32.cont [12/16] %v825, 128
    %856 = vxpose.xlu0.b32.cont [13/16] %v830, 128
    %857 = vxpose.xlu0.b32.cont [14/16] %v833, 128
    %858 = vxpose.xlu0.b32.cont [15/16] %v838, 128
    %859 = vxpose.xlu0.b32.end [16/16] %v841, 128
    %v860 = vpop.trf.xlu0
    %v861 = vpop.trf.xlu0
    %v862 = vpop.trf.xlu0
    %v863 = vpop.trf.xlu0
    %v864 = vpop.trf.xlu0
    %v865 = vpop.trf.xlu0
    %v866 = vpop.trf.xlu0
    %v867 = vpop.trf.xlu0
    %v868 = vpop.trf.xlu0
    %v869 = vpop.trf.xlu0
    %v870 = vpop.trf.xlu0
    %v871 = vpop.trf.xlu0
    %v872 = vpop.trf.xlu0
    %v873 = vpop.trf.xlu0
    %v874 = vpop.trf.xlu0
    %v875 = vpop.trf.xlu0
    %876 = vst [vmem:[#allocation7] sm:$0xff] %v860
    // Predicated region
    $region22: #{tpu_custom_call.1} parent=1 // pred_check
      _
    $region23: #{tpu_custom_call.1} parent=1 // pred_check_branch
      %878 = sbr.rel (0) target = $region25
    $region24: #{tpu_custom_call.1} parent=1 // pred_region
      %s880 = ssub.s32 128, 128
      %881 = vsyncadd [#allocation4], %s880
      %s883 = sshll.u32 [#allocation7], 4
      %s884 = int_to_ptr.vmem [resolvable:$true] %s883
      %886 = dma.vmem_to_hbm [thread:$0]  %s884, 128, %s3, [#allocation4]
    $region25: #{tpu_custom_call.1} parent=1 // pred_fallthru
      _
    // Predicated region
    $region26: #{tpu_custom_call.1} parent=1 // pred_check
      _
    $region27: #{tpu_custom_call.1} parent=1 // pred_check_branch
      %888 = sbr.rel (0) target = $region29
    $region28: #{tpu_custom_call.1} parent=1 // pred_region
      %889 = dma.done [#allocation4], 128
    $region29: #{tpu_custom_call.1} parent=1 // pred_fallthru
      _
    %890 = vsyncpa [#allocation3], 1
    %891 = vsyncpa [#allocation6], 1
    %892 = vsyncpa [#allocation4], 1

</llo_original>
